<compile_context>
chip_gen: v7x
topology: tpu7x:2x2x1
jax: 0.10.0
libtpu: 0.0.40
codegen_flags: <defaults>
</compile_context>

<pallas_src>
import jax
import jax.numpy as jnp
from jax.experimental import pallas as pl
from jax.experimental.pallas import tpu as pltpu

# ----------------------------- config --------------------------------------
B = 2          # batch
C = 4          # image channels
CC = 4         # condition channels
H = W = 16     # spatial
HW = H * W
K = C + CC     # stacked [x ; cond] channels
HIDDEN = 32    # hidden width of the synthetic denoiser model
TIMESTEPS = 100
BETA_START = 1e-4
BETA_END = 2e-2


# ----------------------------- kernel --------------------------------------
def cloud_diffusion_kernel(xin_ref,    # VMEM (K, B*HW)      [x0 ; cond]
                           nstk_ref,   # VMEM (K, B*HW)      [noise ; 0]
                           sa_ref,     # VMEM (K, B*HW)      sqrt(a_t) on x rows, 1 on cond rows
                           sb_ref,     # VMEM (K, B*HW)      sqrt(1-a_t) on x rows, 0 on cond rows
                           w1t_ref,    # VMEM (HIDDEN, K)    stacked W1ᵀ
                           b1s_ref,    # VMEM (HIDDEN, B*HW) b1 + temb, broadcast per batch lane-segment
                           w2t_ref,    # VMEM (C, HIDDEN)    W2ᵀ
                           b2c_ref,    # VMEM (C, 1)         b2 column
                           loss_ref):  # SMEM (1, 1)         L1 sum
    # --- forward diffusion fused with [xt ; cond] assembly: pure register FMA ---
    xtc = sa_ref[...] * xin_ref[...] + sb_ref[...] * nstk_ref[...]          # (K, B*HW)

    # --- layer 1: single lane-dense MXU matmul over the whole batch ---
    h = jnp.dot(w1t_ref[...], xtc, preferred_element_type=jnp.float32)      # (HIDDEN, B*HW)
    h = jnp.maximum(h + b1s_ref[...], 0.0)

    # --- layer 2 ---
    pred = (jnp.dot(w2t_ref[...], h, preferred_element_type=jnp.float32)
            + b2c_ref[...])                                                  # (C, B*HW)

    # --- L1: one vector abs + one cross-lane/sublane reduce, scalar to SMEM ---
    n_ch = pred.shape[0]
    noise = nstk_ref[0:n_ch, :]                                              # (C, B*HW), static slice
    loss_ref[0, 0] = jnp.sum(jnp.abs(noise - pred))


# ----------------------------- wrapper --------------------------------------
def cloud_diffusion_loss(x0_nchw, cond_nchw, t, noise_nchw, params,
                         alphas_cumprod):
    """L1 diffusion-training loss (CloudDiffusion.forward with explicit t/noise)."""
    Bn, Cn, Hn, Wn = x0_nchw.shape
    CCn = cond_nchw.shape[1]
    HWn = Hn * Wn
    BHWn = Bn * HWn
    Kn = Cn + CCn

    # NCHW -> (channels, B*HW): channels -> sublanes, (batch, pixel) -> lanes.
    def to_cm(x, ch):
        return (jnp.transpose(x.reshape(Bn, ch, HWn), (1, 0, 2))
                .reshape(ch, BHWn).astype(jnp.float32))

    x0_cm = to_cm(x0_nchw, Cn)
    cond_cm = to_cm(cond_nchw, CCn)
    noise_cm = to_cm(noise_nchw, Cn)

    xin = jnp.concatenate([x0_cm, cond_cm], axis=0)                           # (K, B*HW)
    nstk = jnp.concatenate(
        [noise_cm, jnp.zeros((CCn, BHWn), jnp.float32)], axis=0)             # (K, B*HW)

    # _get_index_from_list: gather alphas_cumprod at t, expand to lane-dense scales.
    alpha_t = alphas_cumprod[t]                                               # (B,)
    sa_lane = jnp.repeat(jnp.sqrt(alpha_t), HWn)[None, :]                     # (1, B*HW)
    sb_lane = jnp.repeat(jnp.sqrt(1.0 - alpha_t), HWn)[None, :]               # (1, B*HW)
    row_is_x = (jnp.arange(Kn) < Cn)[:, None]                                 # (K, 1)
    scale_a = jnp.where(row_is_x, sa_lane, 1.0).astype(jnp.float32)           # (K, B*HW)
    scale_b = jnp.where(row_is_x, sb_lane, 0.0).astype(jnp.float32)           # (K, B*HW)

    # sinusoidal time embedding + projection (tiny; fused into the jitted wrapper)
    half = HIDDEN // 2
    freqs = jnp.exp(-jnp.log(10000.0) * jnp.arange(half) / half)
    args = t[:, None].astype(jnp.float32) * freqs[None, :]
    sin_emb = jnp.concatenate([jnp.sin(args), jnp.cos(args)], axis=-1)        # (B, HIDDEN)
    temb = sin_emb @ params["wt"] + params["bt"]                              # (B, HIDDEN)

    # Fold b1 + temb into a lane-dense bias slab (per 256-lane batch segment).
    bt = (params["b1"] + temb).T.astype(jnp.float32)                          # (HIDDEN, B)
    b1s = jnp.broadcast_to(bt[:, :, None],
                           (HIDDEN, Bn, HWn)).reshape(HIDDEN, BHWn)           # (HIDDEN, B*HW)

    w1t = jnp.concatenate([params["w1x"], params["w1c"]],
                          axis=0).T.astype(jnp.float32)                       # (HIDDEN, K)
    w2t = params["w2"].T.astype(jnp.float32)                                  # (C, HIDDEN)
    b2c = params["b2"].T.astype(jnp.float32)                                  # (C, 1)

    vmem_specs = [pl.BlockSpec(memory_space=pltpu.MemorySpace.VMEM)
                  for _ in range(8)]

    loss_sum = pl.pallas_call(
        cloud_diffusion_kernel,
        out_shape=jax.ShapeDtypeStruct((1, 1), jnp.float32),
        in_specs=vmem_specs,
        out_specs=pl.BlockSpec(memory_space=pltpu.MemorySpace.SMEM),
    )(xin, nstk, scale_a, scale_b, w1t, b1s, w2t, b2c)

    return loss_sum[0, 0] / (Bn * Cn * Hn * Wn)


# reference (pure JAX) for a correctness sanity check
def _reference_loss(x0_nchw, cond_nchw, t, noise_nchw, params, alphas_cumprod):
    Bn = x0_nchw.shape[0]
    alpha_t = alphas_cumprod[t].reshape(Bn, 1, 1, 1)
    xt = jnp.sqrt(alpha_t) * x0_nchw + jnp.sqrt(1.0 - alpha_t) * noise_nchw

    half = HIDDEN // 2
    freqs = jnp.exp(-jnp.log(10000.0) * jnp.arange(half) / half)
    args = t[:, None].astype(jnp.float32) * freqs[None, :]
    sin_emb = jnp.concatenate([jnp.sin(args), jnp.cos(args)], axis=-1)
    temb = sin_emb @ params["wt"] + params["bt"]                   # (B, HIDDEN)

    xt_p = jnp.transpose(xt, (0, 2, 3, 1)).reshape(Bn, HW, C)
    cond_p = jnp.transpose(cond_nchw, (0, 2, 3, 1)).reshape(Bn, HW, CC)
    h = (xt_p @ params["w1x"] + cond_p @ params["w1c"]
         + params["b1"] + temb[:, None, :])
    h = jnp.maximum(h, 0.0)
    pred = h @ params["w2"] + params["b2"]                          # (B, HW, C)
    noise_p = jnp.transpose(noise_nchw, (0, 2, 3, 1)).reshape(Bn, HW, C)
    return jnp.mean(jnp.abs(noise_p - pred))


# ----------------------------- main -----------------------------------------
if __name__ == "__main__":
    key = jax.random.PRNGKey(0)
    (k_x0, k_cond, k_t, k_noise,
     k_w1x, k_w1c, k_b1, k_w2, k_b2, k_wt, k_bt) = jax.random.split(key, 11)

    # diffusion schedule (torch.linspace / cumprod equivalent)
    betas = jnp.linspace(BETA_START, BETA_END, TIMESTEPS, dtype=jnp.float32)
    alphas = 1.0 - betas
    alphas_cumprod = jnp.cumprod(alphas)

    # deterministic synthetic model parameters
    params = {
        "w1x": 0.1 * jax.random.normal(k_w1x, (C, HIDDEN), jnp.float32),
        "w1c": 0.1 * jax.random.normal(k_w1c, (CC, HIDDEN), jnp.float32),
        "b1":  0.1 * jax.random.normal(k_b1, (1, HIDDEN), jnp.float32),
        "w2":  0.1 * jax.random.normal(k_w2, (HIDDEN, C), jnp.float32),
        "b2":  0.1 * jax.random.normal(k_b2, (1, C), jnp.float32),
        "wt":  0.1 * jax.random.normal(k_wt, (HIDDEN, HIDDEN), jnp.float32),
        "bt":  0.1 * jax.random.normal(k_bt, (HIDDEN,), jnp.float32),
    }

    # inputs (torch: x0 NCHW, condition NCHW; t ~ randint, noise ~ randn)
    x0 = jax.random.normal(k_x0, (B, C, H, W), jnp.float32)
    condition = jax.random.normal(k_cond, (B, CC, H, W), jnp.float32)
    t = jax.random.randint(k_t, (B,), 0, TIMESTEPS, dtype=jnp.int32)
    noise = jax.random.normal(k_noise, (B, C, H, W), jnp.float32)

    loss_fn = jax.jit(cloud_diffusion_loss)   # fuses wrapper glue (temb, gathers, slabs) with the call
    loss = jax.block_until_ready(loss_fn(x0, condition, t, noise, params,
                                         alphas_cumprod))

    ref = _reference_loss(x0, condition, t, noise, params, alphas_cumprod)
    assert jnp.allclose(loss, ref, rtol=1e-3, atol=1e-5), (loss, ref)

    print("KERNEL_OK")
</pallas_src>

<mosaic_0001>
module attributes {stable_mosaic.version = 11 : i64} {
  func.func @cloud_diffusion_kernel(%arg0: memref<8x512xf32, #tpu.memory_space<vmem>>, %arg1: memref<8x512xf32, #tpu.memory_space<vmem>>, %arg2: memref<8x512xf32, #tpu.memory_space<vmem>>, %arg3: memref<8x512xf32, #tpu.memory_space<vmem>>, %arg4: memref<32x8xf32, #tpu.memory_space<vmem>>, %arg5: memref<32x512xf32, #tpu.memory_space<vmem>>, %arg6: memref<4x32xf32, #tpu.memory_space<vmem>>, %arg7: memref<4x1xf32, #tpu.memory_space<vmem>>, %arg8: memref<1x1xf32, #tpu.memory_space<smem>>) attributes {dimension_semantics = [], scalar_prefetch = 0 : i64, scratch_operands = 0 : i64, tpu.core_type = #tpu.core_type<tc>} {
    %c0 = arith.constant 0 : index
    %c0_0 = arith.constant 0 : index
    %0 = vector.load %arg2[%c0, %c0_0] : memref<8x512xf32, #tpu.memory_space<vmem>>, vector<8x512xf32>
    %c0_1 = arith.constant 0 : index
    %c0_2 = arith.constant 0 : index
    %1 = vector.load %arg0[%c0_1, %c0_2] : memref<8x512xf32, #tpu.memory_space<vmem>>, vector<8x512xf32>
    %2 = arith.mulf %0, %1 : vector<8x512xf32>
    %c0_3 = arith.constant 0 : index
    %c0_4 = arith.constant 0 : index
    %3 = vector.load %arg3[%c0_3, %c0_4] : memref<8x512xf32, #tpu.memory_space<vmem>>, vector<8x512xf32>
    %c0_5 = arith.constant 0 : index
    %c0_6 = arith.constant 0 : index
    %4 = vector.load %arg1[%c0_5, %c0_6] : memref<8x512xf32, #tpu.memory_space<vmem>>, vector<8x512xf32>
    %5 = arith.mulf %3, %4 : vector<8x512xf32>
    %6 = arith.addf %2, %5 : vector<8x512xf32>
    %c0_7 = arith.constant 0 : index
    %c0_8 = arith.constant 0 : index
    %7 = vector.load %arg4[%c0_7, %c0_8] : memref<32x8xf32, #tpu.memory_space<vmem>>, vector<32x8xf32>
    %cst = arith.constant dense<0.000000e+00> : vector<32x512xf32>
    %8 = tpu.matmul %7, %6, %cst {dimension_numbers = #tpu.dot_dimension_numbers<[1], [0], [0], [1], [0, 0, 1, 1], [], []>} : vector<32x8xf32>, vector<8x512xf32>, vector<32x512xf32> -> vector<32x512xf32>
    %c0_9 = arith.constant 0 : index
    %c0_10 = arith.constant 0 : index
    %9 = vector.load %arg5[%c0_9, %c0_10] : memref<32x512xf32, #tpu.memory_space<vmem>>, vector<32x512xf32>
    %10 = arith.addf %8, %9 : vector<32x512xf32>
    %cst_11 = arith.constant 0.000000e+00 : f32
    %11 = vector.broadcast %cst_11 : f32 to vector<32x512xf32>
    %12 = arith.maximumf %10, %11 : vector<32x512xf32>
    %c0_12 = arith.constant 0 : index
    %c0_13 = arith.constant 0 : index
    %13 = vector.load %arg6[%c0_12, %c0_13] : memref<4x32xf32, #tpu.memory_space<vmem>>, vector<4x32xf32>
    %cst_14 = arith.constant dense<0.000000e+00> : vector<4x512xf32>
    %14 = tpu.matmul %13, %12, %cst_14 {dimension_numbers = #tpu.dot_dimension_numbers<[1], [0], [0], [1], [0, 0, 1, 1], [], []>} : vector<4x32xf32>, vector<32x512xf32>, vector<4x512xf32> -> vector<4x512xf32>
    %c0_15 = arith.constant 0 : index
    %c0_16 = arith.constant 0 : index
    %15 = vector.load %arg7[%c0_15, %c0_16] : memref<4x1xf32, #tpu.memory_space<vmem>>, vector<4x1xf32>
    %16 = vector.broadcast %15 : vector<4x1xf32> to vector<4x512xf32>
    %17 = arith.addf %14, %16 : vector<4x512xf32>
    %c0_17 = arith.constant 0 : index
    %c0_18 = arith.constant 0 : index
    %18 = vector.load %arg1[%c0_17, %c0_18] : memref<8x512xf32, #tpu.memory_space<vmem>>, vector<4x512xf32>
    %19 = arith.subf %18, %17 : vector<4x512xf32>
    %20 = math.absf %19 : vector<4x512xf32>
    %21 = vector.shape_cast %20 : vector<4x512xf32> to vector<1x4x512xf32>
    %cst_19 = arith.constant dense<0.000000e+00> : vector<1xf32>
    %22 = vector.multi_reduction <add>, %21, %cst_19 [1, 2] : vector<1x4x512xf32> to vector<1xf32>
    %23 = vector.shape_cast %22 : vector<1xf32> to vector<1x1x1xf32>
    %24 = vector.extract %23[0, 0, 0] : f32 from vector<1x1x1xf32>
    %c0_20 = arith.constant 0 : index
    %c0_21 = arith.constant 0 : index
    %25 = memref.load %arg8[%c0_20, %c0_21] : memref<1x1xf32, #tpu.memory_space<smem>>
    memref.store %24, %arg8[%c0_20, %c0_21] : memref<1x1xf32, #tpu.memory_space<smem>>
    return
  }
}

</mosaic_0001>

<llo_original>
// kernel: cloud_diffusion_loss.1
$region0: #{cloud_diffusion_loss.1}
  #allocation0 [shape = 'u32[]', space=smem, size = 0x4, offset = 0x4, fixed_abs, tag = 'smem constant byte address 0x4 - core index']
  #allocation1 [shape = 'u32[144,128]{1,0:T(1,128)}', space=vmem, size = 0x12000, scoped, tag = 'internal scratch']
  %s0 = inlined_call_operand.vmem [shape: f32[8,512], index: 0, kind: input, shape index: {}]
  %s1 = inlined_call_operand.vmem [shape: f32[8,512], index: 1, kind: input, shape index: {}]
  %s2 = inlined_call_operand.vmem [shape: f32[8,512], index: 2, kind: input, shape index: {}]
  %s3 = inlined_call_operand.vmem [shape: f32[8,512], index: 3, kind: input, shape index: {}]
  %s4 = inlined_call_operand.vmem [shape: f32[32,8], index: 4, kind: input, shape index: {}]
  %s5 = inlined_call_operand.vmem [shape: f32[32,512], index: 5, kind: input, shape index: {}]
  %s6 = inlined_call_operand.vmem [shape: f32[4,32], index: 6, kind: input, shape index: {}]
  %s7 = inlined_call_operand.vmem [shape: f32[4,1], index: 7, kind: input, shape index: {}]
  %s8 = inlined_call_operand.hbm [shape: f32[1,1], index: 8, kind: output, shape index: {}]
  %s9 = sld [smem:[#allocation0]]
  $region42: #{cloud_diffusion_loss.1} parent=0
    _
  %s11 = ssub.s32 1, %s9
  %s12 = scalar_select 0, %s11, %s9
  $region1: #{cloud_diffusion_loss.1} parent=0
    #allocation2 [shape = 'u8[512]{0}', space=smem, size = 0x200, scoped, tag = 'output window, operand 0, single buffered']
    #allocation3 [shape = 's32[1]{0}', space=sflag, size = 0x4, scoped, tag = 'scoped memory for cloud_diffusion_loss.1']
    %13 = vsyncpa [#allocation3], 0
    // Predicated region
    $region2: #{cloud_diffusion_loss.1} parent=1 // pred_check
      _
    $region3: #{cloud_diffusion_loss.1} parent=1 // pred_check_branch
      %15 = sbr.rel (0) target = $region5
    $region4: #{cloud_diffusion_loss.1} parent=1 // pred_region
      _
    $region5: #{cloud_diffusion_loss.1} parent=1 // pred_fallthru
      _
    // Predicated region
    $region6: #{cloud_diffusion_loss.1} parent=1 // pred_check
      _
    $region7: #{cloud_diffusion_loss.1} parent=1 // pred_check_branch
      %17 = sbr.rel (0) target = $region9
    $region8: #{cloud_diffusion_loss.1} parent=1 // pred_region
      _
    $region9: #{cloud_diffusion_loss.1} parent=1 // pred_fallthru
      _
    // Predicated region
    $region10: #{cloud_diffusion_loss.1} parent=1 // pred_check
      _
    $region11: #{cloud_diffusion_loss.1} parent=1 // pred_check_branch
      %19 = sbr.rel (0) target = $region13
    $region12: #{cloud_diffusion_loss.1} parent=1 // pred_region
      _
    $region13: #{cloud_diffusion_loss.1} parent=1 // pred_fallthru
      _
    // Predicated region
    $region14: #{cloud_diffusion_loss.1} parent=1 // pred_check
      _
    $region15: #{cloud_diffusion_loss.1} parent=1 // pred_check_branch
      %21 = sbr.rel (0) target = $region17
    $region16: #{cloud_diffusion_loss.1} parent=1 // pred_region
      _
    $region17: #{cloud_diffusion_loss.1} parent=1 // pred_fallthru
      _
    // Predicated region
    $region18: #{cloud_diffusion_loss.1} parent=1 // pred_check
      _
    $region19: #{cloud_diffusion_loss.1} parent=1 // pred_check_branch
      %23 = sbr.rel (0) target = $region21
    $region20: #{cloud_diffusion_loss.1} parent=1 // pred_region
      _
    $region21: #{cloud_diffusion_loss.1} parent=1 // pred_fallthru
      _
    // Predicated region
    $region22: #{cloud_diffusion_loss.1} parent=1 // pred_check
      _
    $region23: #{cloud_diffusion_loss.1} parent=1 // pred_check_branch
      %25 = sbr.rel (0) target = $region25
    $region24: #{cloud_diffusion_loss.1} parent=1 // pred_region
      _
    $region25: #{cloud_diffusion_loss.1} parent=1 // pred_fallthru
      _
    // Predicated region
    $region26: #{cloud_diffusion_loss.1} parent=1 // pred_check
      _
    $region27: #{cloud_diffusion_loss.1} parent=1 // pred_check_branch
      %27 = sbr.rel (0) target = $region29
    $region28: #{cloud_diffusion_loss.1} parent=1 // pred_region
      _
    $region29: #{cloud_diffusion_loss.1} parent=1 // pred_fallthru
      _
    // Predicated region
    $region30: #{cloud_diffusion_loss.1} parent=1 // pred_check
      _
    $region31: #{cloud_diffusion_loss.1} parent=1 // pred_check_branch
      %29 = sbr.rel (0) target = $region33
    $region32: #{cloud_diffusion_loss.1} parent=1 // pred_region
      _
    $region33: #{cloud_diffusion_loss.1} parent=1 // pred_fallthru
      _
    %v30 = vld [vmem:[%s2] sm:$0xff]
    %v31 = vld [vmem:[%s2 + $0x8] sm:$0xff]
    %v32 = vld [vmem:[%s2 + $0x10] sm:$0xff]
    %v33 = vld [vmem:[%s2 + $0x18] sm:$0xff]
    %v34 = vld [vmem:[%s0] sm:$0xff]
    %v35 = vld [vmem:[%s0 + $0x8] sm:$0xff]
    %v36 = vld [vmem:[%s0 + $0x10] sm:$0xff]
    %v37 = vld [vmem:[%s0 + $0x18] sm:$0xff]
    %v38 = vmul.f32 %v30, %v34
    %v39 = vmul.f32 %v31, %v35
    %v40 = vmul.f32 %v32, %v36
    %v41 = vmul.f32 %v33, %v37
    %v42 = vld [vmem:[%s3] sm:$0xff]
    %v43 = vld [vmem:[%s3 + $0x8] sm:$0xff]
    %v44 = vld [vmem:[%s3 + $0x10] sm:$0xff]
    %v45 = vld [vmem:[%s3 + $0x18] sm:$0xff]
    %v46 = vld [vmem:[%s1] sm:$0xff]
    %v47 = vld [vmem:[%s1 + $0x8] sm:$0xff]
    %v48 = vld [vmem:[%s1 + $0x10] sm:$0xff]
    %v49 = vld [vmem:[%s1 + $0x18] sm:$0xff]
    %v50 = vmul.f32 %v42, %v46
    %v51 = vmul.f32 %v43, %v47
    %v52 = vmul.f32 %v44, %v48
    %v53 = vmul.f32 %v45, %v49
    %v54 = vadd.f32 %v38, %v50
    %v55 = vadd.f32 %v39, %v51
    %v56 = vadd.f32 %v40, %v52
    %v57 = vadd.f32 %v41, %v53
    %v58 = vld [vmem:[%s4] sm:$0xff]
    %v59 = vld [vmem:[%s4 + $0x8] sm:$0xff]
    %v60 = vld [vmem:[%s4 + $0x10] sm:$0xff]
    %v61 = vld [vmem:[%s4 + $0x18] sm:$0xff]
    %v62 = vld [vmem:[%s5] sm:$0xff]
    %v63 = vld [vmem:[%s5 + $0x8] sm:$0xff]
    %v64 = vld [vmem:[%s5 + $0x10] sm:$0xff]
    %v65 = vld [vmem:[%s5 + $0x18] sm:$0xff]
    %v66 = vld [vmem:[%s5 + $0x20] sm:$0xff]
    %v67 = vld [vmem:[%s5 + $0x28] sm:$0xff]
    %v68 = vld [vmem:[%s5 + $0x30] sm:$0xff]
    %v69 = vld [vmem:[%s5 + $0x38] sm:$0xff]
    %v70 = vld [vmem:[%s5 + $0x40] sm:$0xff]
    %v71 = vld [vmem:[%s5 + $0x48] sm:$0xff]
    %v72 = vld [vmem:[%s5 + $0x50] sm:$0xff]
    %v73 = vld [vmem:[%s5 + $0x58] sm:$0xff]
    %v74 = vld [vmem:[%s5 + $0x60] sm:$0xff]
    %v75 = vld [vmem:[%s5 + $0x68] sm:$0xff]
    %v76 = vld [vmem:[%s5 + $0x70] sm:$0xff]
    %v77 = vld [vmem:[%s5 + $0x78] sm:$0xff]
    %vm78 = vcmask 64512
    %v80 = vsel %vm78, %v58, 0
    %v83 = vsel %vm78, %v59, 0
    %v86 = vsel %vm78, %v60, 0
    %v89 = vsel %vm78, %v61, 0
    %91 = vmatprep.subr.mxu0 %v55
    %92 = vmatpush1.msra.mxu0 %v54
    %93 = vmatprep.subr.mxu0 0.0
    %94 = vmatpush1.msra.mxu0 0.0
    %95 = vmatprep.subr.mxu0 0.0
    %96 = vmatpush1.msra.mxu0 0.0
    %97 = vmatprep.subr.mxu0 0.0
    %98 = vmatpush1.msra.mxu0 0.0
    %99 = vmatprep.subr.mxu0 0.0
    %100 = vmatpush1.msra.mxu0 0.0
    %101 = vmatprep.subr.mxu0 0.0
    %102 = vmatpush1.msra.mxu0 0.0
    %103 = vmatprep.subr.mxu0 0.0
    %104 = vmatpush1.msra.mxu0 0.0
    %105 = vmatprep.subr.mxu0 0.0
    %106 = vmatpush1.msra.mxu0 0.0
    %107 = vmatprep.subr.mxu0 0.0
    %108 = vmatpush1.msra.mxu0 0.0
    %109 = vmatprep.subr.mxu0 0.0
    %110 = vmatpush1.msra.mxu0 0.0
    %111 = vmatprep.subr.mxu0 0.0
    %112 = vmatpush1.msra.mxu0 0.0
    %113 = vmatprep.subr.mxu0 0.0
    %114 = vmatpush1.msra.mxu0 0.0
    %115 = vmatprep.subr.mxu0 0.0
    %116 = vmatpush1.msra.mxu0 0.0
    %117 = vmatprep.subr.mxu0 0.0
    %118 = vmatpush1.msra.mxu0 0.0
    %119 = vmatprep.subr.mxu0 0.0
    %120 = vmatpush1.msra.mxu0 0.0
    %121 = vmatprep.subr.mxu0 0.0
    %122 = vmatpush1.msra.mxu0 0.0
    %123 = vmatprep.subr.mxu0 0.0
    %124 = vmatpush1.msra.mxu0 0.0
    %125 = vmatprep.subr.mxu0 0.0
    %126 = vmatpush1.msra.mxu0 0.0
    %127 = vmatprep.subr.mxu0 0.0
    %128 = vmatpush1.msra.mxu0 0.0
    %129 = vmatprep.subr.mxu0 0.0
    %130 = vmatpush1.msra.mxu0 0.0
    %131 = vmatprep.subr.mxu0 0.0
    %132 = vmatpush1.msra.mxu0 0.0
    %133 = vmatprep.subr.mxu0 0.0
    %134 = vmatpush1.msra.mxu0 0.0
    %135 = vmatprep.subr.mxu0 0.0
    %136 = vmatpush1.msra.mxu0 0.0
    %137 = vmatprep.subr.mxu0 0.0
    %138 = vmatpush1.msra.mxu0 0.0
    %139 = vmatprep.subr.mxu0 0.0
    %140 = vmatpush1.msra.mxu0 0.0
    %141 = vmatprep.subr.mxu0 0.0
    %142 = vmatpush1.msra.mxu0 0.0
    %143 = vmatprep.subr.mxu0 0.0
    %144 = vmatpush1.msra.mxu0 0.0
    %145 = vmatprep.subr.mxu0 0.0
    %146 = vmatpush1.msra.mxu0 0.0
    %147 = vmatprep.subr.mxu0 0.0
    %148 = vmatpush1.msra.mxu0 0.0
    %149 = vmatprep.subr.mxu0 0.0
    %150 = vmatpush1.msra.mxu0 0.0
    %151 = vmatprep.subr.mxu0 0.0
    %152 = vmatpush1.msra.mxu0 0.0
    %153 = vmatprep.subr.mxu0 0.0
    %154 = vmatpush1.msra.mxu0 0.0
    %155 = vmatprep.mubr.f32.mxu0 0.0
    %156 = vmatmul.mubr.f32.gmra.mrb[0].mxu0 %v80
    %v157 = vpop.f32.mrb[0].mxu0
    %v158 = vadd.f32 %v62, %v157
    %v159 = vpop.f32.mrb[0].mxu0
    %v160 = vadd.f32 %v63, %v159
    %161 = vmatprep.mubr.f32.mxu0 0.0
    %162 = vmatmul.mubr.f32.gmra.mrb[0].mxu0 %v83
    %v163 = vpop.f32.mrb[0].mxu0
    %v164 = vadd.f32 %v66, %v163
    %v165 = vpop.f32.mrb[0].mxu0
    %v166 = vadd.f32 %v67, %v165
    %167 = vmatprep.mubr.f32.mxu0 0.0
    %168 = vmatmul.mubr.f32.gmra.mrb[0].mxu0 %v86
    %v169 = vpop.f32.mrb[0].mxu0
    %v170 = vadd.f32 %v70, %v169
    %v171 = vpop.f32.mrb[0].mxu0
    %v172 = vadd.f32 %v71, %v171
    %173 = vmatprep.mubr.f32.mxu0 0.0
    %174 = vmatmul.mubr.f32.gmra.mrb[0].mxu0 %v89
    %v175 = vpop.f32.mrb[0].mxu0
    %v176 = vadd.f32 %v74, %v175
    %v177 = vpop.f32.mrb[0].mxu0
    %v178 = vadd.f32 %v75, %v177
    %179 = vdwg.mxu0
    %180 = vmatprep.subr.mxu0 %v57
    %181 = vmatpush1.msra.mxu0 %v56
    %182 = vmatprep.subr.mxu0 0.0
    %183 = vmatpush1.msra.mxu0 0.0
    %184 = vmatprep.subr.mxu0 0.0
    %185 = vmatpush1.msra.mxu0 0.0
    %186 = vmatprep.subr.mxu0 0.0
    %187 = vmatpush1.msra.mxu0 0.0
    %188 = vmatprep.subr.mxu0 0.0
    %189 = vmatpush1.msra.mxu0 0.0
    %190 = vmatprep.subr.mxu0 0.0
    %191 = vmatpush1.msra.mxu0 0.0
    %192 = vmatprep.subr.mxu0 0.0
    %193 = vmatpush1.msra.mxu0 0.0
    %194 = vmatprep.subr.mxu0 0.0
    %195 = vmatpush1.msra.mxu0 0.0
    %196 = vmatprep.subr.mxu0 0.0
    %197 = vmatpush1.msra.mxu0 0.0
    %198 = vmatprep.subr.mxu0 0.0
    %199 = vmatpush1.msra.mxu0 0.0
    %200 = vmatprep.subr.mxu0 0.0
    %201 = vmatpush1.msra.mxu0 0.0
    %202 = vmatprep.subr.mxu0 0.0
    %203 = vmatpush1.msra.mxu0 0.0
    %204 = vmatprep.subr.mxu0 0.0
    %205 = vmatpush1.msra.mxu0 0.0
    %206 = vmatprep.subr.mxu0 0.0
    %207 = vmatpush1.msra.mxu0 0.0
    %208 = vmatprep.subr.mxu0 0.0
    %209 = vmatpush1.msra.mxu0 0.0
    %210 = vmatprep.subr.mxu0 0.0
    %211 = vmatpush1.msra.mxu0 0.0
    %212 = vmatprep.subr.mxu0 0.0
    %213 = vmatpush1.msra.mxu0 0.0
    %214 = vmatprep.subr.mxu0 0.0
    %215 = vmatpush1.msra.mxu0 0.0
    %216 = vmatprep.subr.mxu0 0.0
    %217 = vmatpush1.msra.mxu0 0.0
    %218 = vmatprep.subr.mxu0 0.0
    %219 = vmatpush1.msra.mxu0 0.0
    %220 = vmatprep.subr.mxu0 0.0
    %221 = vmatpush1.msra.mxu0 0.0
    %222 = vmatprep.subr.mxu0 0.0
    %223 = vmatpush1.msra.mxu0 0.0
    %224 = vmatprep.subr.mxu0 0.0
    %225 = vmatpush1.msra.mxu0 0.0
    %226 = vmatprep.subr.mxu0 0.0
    %227 = vmatpush1.msra.mxu0 0.0
    %228 = vmatprep.subr.mxu0 0.0
    %229 = vmatpush1.msra.mxu0 0.0
    %230 = vmatprep.subr.mxu0 0.0
    %231 = vmatpush1.msra.mxu0 0.0
    %232 = vmatprep.subr.mxu0 0.0
    %233 = vmatpush1.msra.mxu0 0.0
    %234 = vmatprep.subr.mxu0 0.0
    %235 = vmatpush1.msra.mxu0 0.0
    %236 = vmatprep.subr.mxu0 0.0
    %237 = vmatpush1.msra.mxu0 0.0
    %238 = vmatprep.subr.mxu0 0.0
    %239 = vmatpush1.msra.mxu0 0.0
    %240 = vmatprep.subr.mxu0 0.0
    %241 = vmatpush1.msra.mxu0 0.0
    %242 = vmatprep.subr.mxu0 0.0
    %243 = vmatpush1.msra.mxu0 0.0
    %244 = vmatprep.mubr.f32.mxu0 0.0
    %245 = vmatmul.mubr.f32.gmra.mrb[0].mxu0 %v80
    %v246 = vpop.f32.mrb[0].mxu0
    %v247 = vadd.f32 %v64, %v246
    %v248 = vpop.f32.mrb[0].mxu0
    %v249 = vadd.f32 %v65, %v248
    %250 = vmatprep.mubr.f32.mxu0 0.0
    %251 = vmatmul.mubr.f32.gmra.mrb[0].mxu0 %v83
    %v252 = vpop.f32.mrb[0].mxu0
    %v253 = vadd.f32 %v68, %v252
    %v254 = vpop.f32.mrb[0].mxu0
    %v255 = vadd.f32 %v69, %v254
    %256 = vmatprep.mubr.f32.mxu0 0.0
    %257 = vmatmul.mubr.f32.gmra.mrb[0].mxu0 %v86
    %v258 = vpop.f32.mrb[0].mxu0
    %v259 = vadd.f32 %v72, %v258
    %v260 = vpop.f32.mrb[0].mxu0
    %v261 = vadd.f32 %v73, %v260
    %262 = vmatprep.mubr.f32.mxu0 0.0
    %263 = vmatmul.mubr.f32.gmra.mrb[0].mxu0 %v89
    %v264 = vpop.f32.mrb[0].mxu0
    %v265 = vadd.f32 %v76, %v264
    %v266 = vpop.f32.mrb[0].mxu0
    %v267 = vadd.f32 %v77, %v266
    %268 = vdwg.mxu0
    %v269 = vmax.f32 %v158, 0.0
    %v270 = vmax.f32 %v160, 0.0
    %v271 = vmax.f32 %v247, 0.0
    %v272 = vmax.f32 %v249, 0.0
    %v273 = vmax.f32 %v164, 0.0
    %v274 = vmax.f32 %v166, 0.0
    %v275 = vmax.f32 %v253, 0.0
    %v276 = vmax.f32 %v255, 0.0
    %v277 = vmax.f32 %v170, 0.0
    %v278 = vmax.f32 %v172, 0.0
    %v279 = vmax.f32 %v259, 0.0
    %v280 = vmax.f32 %v261, 0.0
    %v281 = vmax.f32 %v176, 0.0
    %v282 = vmax.f32 %v178, 0.0
    %v283 = vmax.f32 %v265, 0.0
    %v284 = vmax.f32 %v267, 0.0
    %v285 = vld [vmem:[%s6] sm:$0xf]
    %v286 = vld [vmem:[%s7] sm:$0xf]
    %288 = vset.pattern.permute.xlu0 0
    %289 = vperm.xlu0 %288, %v286
    %v290 = vpop.permute.xlu0 %289
    %vm292 = vcmask 261120
    %v294 = vsel %vm292, %v285, 0
    %296 = vmatprep.subr.mxu0 %v270
    %297 = vmatpush1.msra.mxu0 %v269
    %298 = vmatprep.subr.mxu0 %v274
    %299 = vmatpush1.msra.mxu0 %v273
    %300 = vmatprep.subr.mxu0 %v278
    %301 = vmatpush1.msra.mxu0 %v277
    %302 = vmatprep.subr.mxu0 %v282
    %303 = vmatpush1.msra.mxu0 %v281
    %304 = vmatprep.subr.mxu0 0.0
    %305 = vmatpush1.msra.mxu0 0.0
    %306 = vmatprep.subr.mxu0 0.0
    %307 = vmatpush1.msra.mxu0 0.0
    %308 = vmatprep.subr.mxu0 0.0
    %309 = vmatpush1.msra.mxu0 0.0
    %310 = vmatprep.subr.mxu0 0.0
    %311 = vmatpush1.msra.mxu0 0.0
    %312 = vmatprep.subr.mxu0 0.0
    %313 = vmatpush1.msra.mxu0 0.0
    %314 = vmatprep.subr.mxu0 0.0
    %315 = vmatpush1.msra.mxu0 0.0
    %316 = vmatprep.subr.mxu0 0.0
    %317 = vmatpush1.msra.mxu0 0.0
    %318 = vmatprep.subr.mxu0 0.0
    %319 = vmatpush1.msra.mxu0 0.0
    %320 = vmatprep.subr.mxu0 0.0
    %321 = vmatpush1.msra.mxu0 0.0
    %322 = vmatprep.subr.mxu0 0.0
    %323 = vmatpush1.msra.mxu0 0.0
    %324 = vmatprep.subr.mxu0 0.0
    %325 = vmatpush1.msra.mxu0 0.0
    %326 = vmatprep.subr.mxu0 0.0
    %327 = vmatpush1.msra.mxu0 0.0
    %328 = vmatprep.subr.mxu0 0.0
    %329 = vmatpush1.msra.mxu0 0.0
    %330 = vmatprep.subr.mxu0 0.0
    %331 = vmatpush1.msra.mxu0 0.0
    %332 = vmatprep.subr.mxu0 0.0
    %333 = vmatpush1.msra.mxu0 0.0
    %334 = vmatprep.subr.mxu0 0.0
    %335 = vmatpush1.msra.mxu0 0.0
    %336 = vmatprep.subr.mxu0 0.0
    %337 = vmatpush1.msra.mxu0 0.0
    %338 = vmatprep.subr.mxu0 0.0
    %339 = vmatpush1.msra.mxu0 0.0
    %340 = vmatprep.subr.mxu0 0.0
    %341 = vmatpush1.msra.mxu0 0.0
    %342 = vmatprep.subr.mxu0 0.0
    %343 = vmatpush1.msra.mxu0 0.0
    %344 = vmatprep.subr.mxu0 0.0
    %345 = vmatpush1.msra.mxu0 0.0
    %346 = vmatprep.subr.mxu0 0.0
    %347 = vmatpush1.msra.mxu0 0.0
    %348 = vmatprep.subr.mxu0 0.0
    %349 = vmatpush1.msra.mxu0 0.0
    %350 = vmatprep.subr.mxu0 0.0
    %351 = vmatpush1.msra.mxu0 0.0
    %352 = vmatprep.subr.mxu0 0.0
    %353 = vmatpush1.msra.mxu0 0.0
    %354 = vmatprep.subr.mxu0 0.0
    %355 = vmatpush1.msra.mxu0 0.0
    %356 = vmatprep.subr.mxu0 0.0
    %357 = vmatpush1.msra.mxu0 0.0
    %358 = vmatprep.subr.mxu0 0.0
    %359 = vmatpush1.msra.mxu0 0.0
    %360 = vmatprep.mubr.f32.mxu0 0.0
    %361 = vmatmul.mubr.f32.gmra.mrb[0].mxu0 %v294
    %v362 = vpop.f32.mrb[0].mxu0
    %v363 = vadd.f32 %v290, %v362
    %v364 = vpop.f32.mrb[0].mxu0
    %v365 = vadd.f32 %v290, %v364
    %366 = vdwg.mxu0
    %367 = vmatprep.subr.mxu0 %v272
    %368 = vmatpush1.msra.mxu0 %v271
    %369 = vmatprep.subr.mxu0 %v276
    %370 = vmatpush1.msra.mxu0 %v275
    %371 = vmatprep.subr.mxu0 %v280
    %372 = vmatpush1.msra.mxu0 %v279
    %373 = vmatprep.subr.mxu0 %v284
    %374 = vmatpush1.msra.mxu0 %v283
    %375 = vmatprep.subr.mxu0 0.0
    %376 = vmatpush1.msra.mxu0 0.0
    %377 = vmatprep.subr.mxu0 0.0
    %378 = vmatpush1.msra.mxu0 0.0
    %379 = vmatprep.subr.mxu0 0.0
    %380 = vmatpush1.msra.mxu0 0.0
    %381 = vmatprep.subr.mxu0 0.0
    %382 = vmatpush1.msra.mxu0 0.0
    %383 = vmatprep.subr.mxu0 0.0
    %384 = vmatpush1.msra.mxu0 0.0
    %385 = vmatprep.subr.mxu0 0.0
    %386 = vmatpush1.msra.mxu0 0.0
    %387 = vmatprep.subr.mxu0 0.0
    %388 = vmatpush1.msra.mxu0 0.0
    %389 = vmatprep.subr.mxu0 0.0
    %390 = vmatpush1.msra.mxu0 0.0
    %391 = vmatprep.subr.mxu0 0.0
    %392 = vmatpush1.msra.mxu0 0.0
    %393 = vmatprep.subr.mxu0 0.0
    %394 = vmatpush1.msra.mxu0 0.0
    %395 = vmatprep.subr.mxu0 0.0
    %396 = vmatpush1.msra.mxu0 0.0
    %397 = vmatprep.subr.mxu0 0.0
    %398 = vmatpush1.msra.mxu0 0.0
    %399 = vmatprep.subr.mxu0 0.0
    %400 = vmatpush1.msra.mxu0 0.0
    %401 = vmatprep.subr.mxu0 0.0
    %402 = vmatpush1.msra.mxu0 0.0
    %403 = vmatprep.subr.mxu0 0.0
    %404 = vmatpush1.msra.mxu0 0.0
    %405 = vmatprep.subr.mxu0 0.0
    %406 = vmatpush1.msra.mxu0 0.0
    %407 = vmatprep.subr.mxu0 0.0
    %408 = vmatpush1.msra.mxu0 0.0
    %409 = vmatprep.subr.mxu0 0.0
    %410 = vmatpush1.msra.mxu0 0.0
    %411 = vmatprep.subr.mxu0 0.0
    %412 = vmatpush1.msra.mxu0 0.0
    %413 = vmatprep.subr.mxu0 0.0
    %414 = vmatpush1.msra.mxu0 0.0
    %415 = vmatprep.subr.mxu0 0.0
    %416 = vmatpush1.msra.mxu0 0.0
    %417 = vmatprep.subr.mxu0 0.0
    %418 = vmatpush1.msra.mxu0 0.0
    %419 = vmatprep.subr.mxu0 0.0
    %420 = vmatpush1.msra.mxu0 0.0
    %421 = vmatprep.subr.mxu0 0.0
    %422 = vmatpush1.msra.mxu0 0.0
    %423 = vmatprep.subr.mxu0 0.0
    %424 = vmatpush1.msra.mxu0 0.0
    %425 = vmatprep.subr.mxu0 0.0
    %426 = vmatpush1.msra.mxu0 0.0
    %427 = vmatprep.subr.mxu0 0.0
    %428 = vmatpush1.msra.mxu0 0.0
    %429 = vmatprep.subr.mxu0 0.0
    %430 = vmatpush1.msra.mxu0 0.0
    %431 = vmatprep.mubr.f32.mxu0 0.0
    %432 = vmatmul.mubr.f32.gmra.mrb[0].mxu0 %v294
    %v433 = vpop.f32.mrb[0].mxu0
    %v434 = vadd.f32 %v290, %v433
    %v435 = vpop.f32.mrb[0].mxu0
    %v436 = vadd.f32 %v290, %v435
    %437 = vdwg.mxu0
    %v438 = vld [vmem:[%s1] sm:$0xf]
    %v439 = vld [vmem:[%s1 + $0x8] sm:$0xf]
    %v440 = vld [vmem:[%s1 + $0x10] sm:$0xf]
    %v441 = vld [vmem:[%s1 + $0x18] sm:$0xf]
    %v442 = vsub.f32 %v438, %v363
    %v443 = vsub.f32 %v439, %v365
    %v444 = vsub.f32 %v440, %v434
    %v445 = vsub.f32 %v441, %v436
    %v446 = vand.u32 2147483647, %v442
    %v447 = vand.u32 2147483647, %v443
    %v448 = vand.u32 2147483647, %v444
    %v449 = vand.u32 2147483647, %v445
    %vm450 = vcmask 1043456
    %v451 = vsel %vm450, %v446, 0.0
    %v452 = vsel %vm450, %v447, 0.0
    %v453 = vadd.f32 %v451, %v452
    %v454 = vsel %vm450, %v448, 0.0
    %v455 = vadd.f32 %v453, %v454
    %v456 = vsel %vm450, %v449, 0.0
    %v457 = vadd.f32 %v455, %v456
    %458 = vadd.xlane.f32.xlu0 %v457
    %v459 = vpop.xlane.xlu0 %458
    %v460 = vrot.slane %v459, 4
    %v461 = vadd.f32 %v459, %v460
    %v462 = vrot.slane %v461, 2
    %v463 = vadd.f32 %v461, %v462
    %v464 = vrot.slane %v463, 1
    %v465 = vadd.f32 %v463, %v464
    %s466 = vtos %v465
    %s467 = scalar_lea.smem [#allocation2], 0
    %468 = sst [smem:[%s467]] %s466
    // Predicated region
    $region34: #{cloud_diffusion_loss.1} parent=1 // pred_check
      _
    $region35: #{cloud_diffusion_loss.1} parent=1 // pred_check_branch
      %470 = sbr.rel (0) target = $region37
    $region36: #{cloud_diffusion_loss.1} parent=1 // pred_region
      %s472 = ssub.s32 16, 16
      %473 = vsyncadd [#allocation3], %s472
      %476 = dma.smem_to_hbm [#allocation2], 16, %s8, [#allocation3]
    $region37: #{cloud_diffusion_loss.1} parent=1 // pred_fallthru
      _
    // Predicated region
    $region38: #{cloud_diffusion_loss.1} parent=1 // pred_check
      _
    $region39: #{cloud_diffusion_loss.1} parent=1 // pred_check_branch
      %478 = sbr.rel (0) target = $region41
    $region40: #{cloud_diffusion_loss.1} parent=1 // pred_region
      %479 = dma.done [#allocation3], 16
    $region41: #{cloud_diffusion_loss.1} parent=1 // pred_fallthru
      _
    %480 = sfence
    %481 = vsyncpa [#allocation3], 1

</llo_original>
